<compile_context>
chip_gen: v7x
topology: tpu7x:2x2x1
jax: 0.10.0
libtpu: 0.0.40
codegen_flags: <defaults>
</compile_context>

<pallas_src>
import math

import jax
import jax.numpy as jnp
from jax.experimental import pallas as pl
from jax.experimental.pallas import tpu as pltpu

_INV_LN2 = 1.0 / math.log(2.0)


def _extended_kernel(x_ref, out_ref):
    # x_ref  : (tr, tl)    tile of the (N, R, L) input   (N-dim squeezed)
    # out_ref: (4, tr, tl) tile of the (N, 4, R, L) output (N-dim squeezed)
    x = x_ref[...]

    # x**8 via repeated squaring (pure VPU, correct for negative x).
    x2 = x * x
    x4 = x2 * x2
    out_ref[0] = x4 * x4

    xc = jnp.clip(x, 0.0, 1.0)
    # clip(x,0,1)**(1/8) as exp(log(x)/8): 2 EUP ops instead of 3 sqrt.
    # xc == 0 -> log = -inf -> exp(-inf) = 0, the correct value of 0**(1/8).
    out_ref[1] = jnp.exp(0.125 * jnp.log(xc))

    # log2(clip(x,0,1)+1) computed as ln(.)/ln(2) to match the torch module.
    out_ref[2] = jnp.log(xc + 1.0) * _INV_LN2

    # exp(x - 1)
    out_ref[3] = jnp.exp(x - 1.0)


def _round_up(v, m):
    return -(-v // m) * m


def _plan_tiles(P, itemsize, batch, *, l_max=2048, vmem_budget=10 * 1024 * 1024):
    """Factor P into (R, L) (so the reshape stays free) and pick (tr, tl) blocks."""
    # Divisors of P (conv-sized products; sqrt scan is negligible).
    divisors = []
    d = 1
    while d * d <= P:
        if P % d == 0:
            divisors.append(d)
            divisors.append(P // d)
        d += 1

    def score(L):
        R = P // L
        if L <= l_max:
            lane = L / float(_round_up(L, 128))      # density of a full-L block
        else:
            lane = 1.0 if L % 128 == 0 else 0.95     # will be tiled in 128-wide chunks
        sub = 1.0 if R >= 8 else R / 8.0
        # tie-break: larger (capped) L => longer contiguous output rows per DMA.
        return (lane * sub, min(L, l_max))

    L = max(divisors, key=score)
    R = P // L

    # Lane tile: full L when it fits (contiguous per-feature rows), else 128-aligned.
    tl = L if L <= l_max else (l_max // 128) * 128

    # Sublane tile: 2 buffers x (1 input + 4 output) blocks must fit the budget.
    elem_cap = max(128, vmem_budget // (10 * itemsize))
    max_tr = max(1, elem_cap // tl)
    if R <= max_tr:
        tr = R                                       # full-dim block (always legal)
    else:
        tr = max(8, (max_tr // 8) * 8)               # multiple of 8

    # Guarantee >= 2 grid steps so both v7x TensorCores get work (free on v5e/v6e).
    if batch == 1 and -(-R // tr) == 1 and -(-L // tl) == 1:
        if R >= 16:
            tr = _round_up(-(-R // 2), 8)
        elif L >= 256 and L % 128 == 0:
            tl = max(128, ((L // 2) // 128) * 128)
        # else: slab too small to split cleanly; a single-step grid is fine.

    return R, L, tr, tl


def create_extended_input(x):
    """x: (N, C, H, W) -> (N, 4*C, H, W); channel blocks [pow8 | root8 | log2 | exp]."""
    N, C, H, W = x.shape
    P = C * H * W
    itemsize = jnp.dtype(x.dtype).itemsize

    R, L, tr, tl = _plan_tiles(P, itemsize, N)
    x3 = x.reshape(N, R, L)                          # contiguous reshape, free
    grid = (N, -(-R // tr), -(-L // tl))

    size = N * P
    cost = pl.CostEstimate(
        flops=9 * size,
        transcendentals=4 * size,                    # (log+exp) + log + exp per elem
        bytes_accessed=(1 + 4) * size * itemsize,    # 1 read + 4 writes per elem
    )

    out = pl.pallas_call(
        _extended_kernel,
        out_shape=jax.ShapeDtypeStruct((N, 4, R, L), x.dtype),
        grid=grid,
        in_specs=[pl.BlockSpec((None, tr, tl), lambda n, r, k: (n, r, k))],
        out_specs=pl.BlockSpec((None, 4, tr, tl), lambda n, r, k: (n, 0, r, k)),
        compiler_params=pltpu.CompilerParams(
            dimension_semantics=("parallel", "parallel", "parallel"),
            vmem_limit_bytes=32 * 1024 * 1024,
        ),
        cost_estimate=cost,
    )(x3)

    # (N, 4, R, L) -> (N, 4*C, H, W): contiguous reshape; channel order matches
    # torch.cat([pow, root, log, exp], axis=1).
    return out.reshape(N, 4 * C, H, W)


class PredictiveExtendedNN:
    """JAX/Pallas port. The torch module has no parameters (device/dropout unused)."""

    def __init__(self, input_size, output_size, device=None, dropout: float = 0.0):
        del input_size, output_size, device, dropout  # purely functional forward

    def __call__(self, x):
        return create_extended_input(x)


def _reference(x):
    """Pure-JAX reference matching the PyTorch semantics."""
    xc = jnp.clip(x, 0.0, 1.0)
    feats = [
        x ** 8,
        xc ** (1.0 / 8.0),
        jnp.log(xc + 1.0) / math.log(2.0),
        jnp.exp(x - 1.0),
    ]
    return jnp.concatenate(feats, axis=1)


def _check(x):
    out = jax.block_until_ready(create_extended_input(x))
    ref = _reference(x)
    assert out.shape == ref.shape, (out.shape, ref.shape)
    err = float(jnp.max(jnp.abs(out - ref)))
    assert jnp.allclose(out, ref, atol=1e-5, rtol=1e-5), err
    return out


if __name__ == "__main__":
    key = jax.random.PRNGKey(0)
    k0, k1, k2 = jax.random.split(key, 3)

    # Primary shape (N, C, H, W) = (2, 4, 16, 16): P=1024 re-factors to a dense (8, 128).
    x = jax.random.uniform(k0, (2, 4, 16, 16), jnp.float32, minval=-0.5, maxval=1.5)
    model = PredictiveExtendedNN(input_size=4, output_size=16)
    out = jax.block_until_ready(model(x))
    ref = _reference(x)
    assert out.shape == (2, 16, 16, 16), out.shape
    assert jnp.allclose(out, ref, atol=1e-5, rtol=1e-5), float(jnp.max(jnp.abs(out - ref)))

    # P not divisible by 128: falls back to the densest divisor factorization (8, 360).
    _check(jax.random.uniform(k1, (1, 5, 24, 24), jnp.float32, minval=-0.5, maxval=1.5))

    # N == 1 with 128-divisible P: exercises the >=2-grid-step split for v7x.
    _check(jax.random.uniform(k2, (1, 8, 32, 32), jnp.float32, minval=-0.5, maxval=1.5))

    print("KERNEL_OK")
</pallas_src>

<mosaic_0001>
module attributes {stable_mosaic.version = 11 : i64} {
  func.func @_extended_kernel(%arg0: i32, %arg1: i32, %arg2: i32, %arg3: memref<1x8x128xf32, #tpu.memory_space<vmem>>, %arg4: memref<1x4x8x128xf32, #tpu.memory_space<vmem>>) attributes {dimension_semantics = [#tpu.dimension_semantics<parallel>, #tpu.dimension_semantics<parallel>, #tpu.dimension_semantics<parallel>], iteration_bounds = array<i64: 2, 1, 1>, scalar_prefetch = 0 : i64, scratch_operands = 0 : i64, tpu.core_type = #tpu.core_type<tc>, window_params = [{transform_indices = @transform_0, window_bounds = array<i64: 1, 8, 128>}, {transform_indices = @transform_1, window_bounds = array<i64: 1, 4, 8, 128>}]} {
    %c0 = arith.constant 0 : index
    %c0_0 = arith.constant 0 : index
    %c0_1 = arith.constant 0 : index
    %0 = vector.load %arg3[%c0, %c0_0, %c0_1] : memref<1x8x128xf32, #tpu.memory_space<vmem>>, vector<1x8x128xf32>
    %1 = vector.shape_cast %0 : vector<1x8x128xf32> to vector<8x128xf32>
    %2 = arith.mulf %1, %1 : vector<8x128xf32>
    %3 = arith.mulf %2, %2 : vector<8x128xf32>
    %4 = arith.mulf %3, %3 : vector<8x128xf32>
    %c0_2 = arith.constant 0 : index
    %c0_3 = arith.constant 0 : index
    %c0_4 = arith.constant 0 : index
    %c0_5 = arith.constant 0 : index
    %5 = vector.load %arg4[%c0_2, %c0_3, %c0_4, %c0_5] : memref<1x4x8x128xf32, #tpu.memory_space<vmem>>, vector<1x1x8x128xf32>
    %6 = vector.shape_cast %5 : vector<1x1x8x128xf32> to vector<8x128xf32>
    %7 = vector.shape_cast %4 : vector<8x128xf32> to vector<1x1x8x128xf32>
    tpu.vector_store %arg4[%c0_2, %c0_3, %c0_4, %c0_5], %7 {strides = array<i32>} : memref<1x4x8x128xf32, #tpu.memory_space<vmem>>, vector<1x1x8x128xf32>,
    %cst = arith.constant 0.000000e+00 : f32
    %cst_6 = arith.constant 1.000000e+00 : f32
    %8 = vector.broadcast %cst : f32 to vector<8x128xf32>
    %9 = arith.maximumf %8, %1 : vector<8x128xf32>
    %10 = vector.broadcast %cst_6 : f32 to vector<8x128xf32>
    %11 = arith.minimumf %10, %9 : vector<8x128xf32>
    %12 = math.log %11 : vector<8x128xf32>
    %cst_7 = arith.constant 1.250000e-01 : f32
    %13 = vector.broadcast %cst_7 : f32 to vector<8x128xf32>
    %14 = arith.mulf %13, %12 : vector<8x128xf32>
    %15 = math.exp %14 : vector<8x128xf32>
    %c0_8 = arith.constant 0 : index
    %c1 = arith.constant 1 : index
    %c0_9 = arith.constant 0 : index
    %c0_10 = arith.constant 0 : index
    %16 = vector.load %arg4[%c0_8, %c1, %c0_9, %c0_10] : memref<1x4x8x128xf32, #tpu.memory_space<vmem>>, vector<1x1x8x128xf32>
    %17 = vector.shape_cast %16 : vector<1x1x8x128xf32> to vector<8x128xf32>
    %18 = vector.shape_cast %15 : vector<8x128xf32> to vector<1x1x8x128xf32>
    tpu.vector_store %arg4[%c0_8, %c1, %c0_9, %c0_10], %18 {strides = array<i32>} : memref<1x4x8x128xf32, #tpu.memory_space<vmem>>, vector<1x1x8x128xf32>,
    %cst_11 = arith.constant 1.000000e+00 : f32
    %19 = vector.broadcast %cst_11 : f32 to vector<8x128xf32>
    %20 = arith.addf %11, %19 : vector<8x128xf32>
    %21 = math.log %20 : vector<8x128xf32>
    %cst_12 = arith.constant 1.44269502 : f32
    %22 = vector.broadcast %cst_12 : f32 to vector<8x128xf32>
    %23 = arith.mulf %21, %22 : vector<8x128xf32>
    %c0_13 = arith.constant 0 : index
    %c2 = arith.constant 2 : index
    %c0_14 = arith.constant 0 : index
    %c0_15 = arith.constant 0 : index
    %24 = vector.load %arg4[%c0_13, %c2, %c0_14, %c0_15] : memref<1x4x8x128xf32, #tpu.memory_space<vmem>>, vector<1x1x8x128xf32>
    %25 = vector.shape_cast %24 : vector<1x1x8x128xf32> to vector<8x128xf32>
    %26 = vector.shape_cast %23 : vector<8x128xf32> to vector<1x1x8x128xf32>
    tpu.vector_store %arg4[%c0_13, %c2, %c0_14, %c0_15], %26 {strides = array<i32>} : memref<1x4x8x128xf32, #tpu.memory_space<vmem>>, vector<1x1x8x128xf32>,
    %cst_16 = arith.constant 1.000000e+00 : f32
    %27 = vector.broadcast %cst_16 : f32 to vector<8x128xf32>
    %28 = arith.subf %1, %27 : vector<8x128xf32>
    %29 = math.exp %28 : vector<8x128xf32>
    %c0_17 = arith.constant 0 : index
    %c3 = arith.constant 3 : index
    %c0_18 = arith.constant 0 : index
    %c0_19 = arith.constant 0 : index
    %30 = vector.load %arg4[%c0_17, %c3, %c0_18, %c0_19] : memref<1x4x8x128xf32, #tpu.memory_space<vmem>>, vector<1x1x8x128xf32>
    %31 = vector.shape_cast %30 : vector<1x1x8x128xf32> to vector<8x128xf32>
    %32 = vector.shape_cast %29 : vector<8x128xf32> to vector<1x1x8x128xf32>
    tpu.vector_store %arg4[%c0_17, %c3, %c0_18, %c0_19], %32 {strides = array<i32>} : memref<1x4x8x128xf32, #tpu.memory_space<vmem>>, vector<1x1x8x128xf32>,
    return
  }
  func.func @transform_0(%arg0: i32, %arg1: i32, %arg2: i32) -> (i32, i32, i32) {
    %c0_i32 = arith.constant 0 : i32
    return %arg0, %arg1, %arg2 : i32, i32, i32
  }
  func.func @transform_1(%arg0: i32, %arg1: i32, %arg2: i32) -> (i32, i32, i32, i32) {
    %c0_i32 = arith.constant 0 : i32
    %c0_i32_0 = arith.constant 0 : i32
    return %arg0, %c0_i32, %arg1, %arg2 : i32, i32, i32, i32
  }
}

</mosaic_0001>

<llo_original>
// kernel: tpu_custom_call.1
$region0: #{tpu_custom_call.1}
  #allocation0 [shape = 'u32[]', space=smem, size = 0x4, offset = 0x4, fixed_abs, tag = 'smem constant byte address 0x4 - core index']
  #allocation1 [shape = 'u32[144,128]{1,0:T(1,128)}', space=vmem, size = 0x12000, scoped, tag = 'internal scratch']
  %s0 = inlined_call_operand.hbm [shape: f32[2,8,128], index: 0, kind: input, shape index: {}]
  %s1 = inlined_call_operand.hbm [shape: f32[2,4,8,128], index: 1, kind: output, shape index: {}]
  %s2 = sld [smem:[#allocation0]]
  $region41: #{tpu_custom_call.1} parent=0
    _
  %s4 = ssub.s32 1, %s2
  %s5 = scalar_select 0, %s4, %s2
  $region1: #{tpu_custom_call.1} parent=0
    #allocation2 [shape = 'u8[8192]{0}', space=vmem, size = 0x2000, scoped, tag = 'input window, operand 0']
    #allocation3 [shape = 's32[2]{0}', space=sflag, size = 0x8, scoped, tag = 'scoped memory for tpu_custom_call.1']
    #allocation4 [shape = 's32[2]{0}', space=sflag, size = 0x8, scoped, tag = 'scoped memory for tpu_custom_call.1']
    #allocation5 [shape = 'u8[32768]{0}', space=vmem, size = 0x8000, scoped, tag = 'output window, operand 0']
    %6 = vsyncpa [#allocation3], 0
    %s7 = scalar_lea.sflag [#allocation3], 1
    %8 = vsyncpa %s7, 0
    %9 = vsyncpa [#allocation4], 0
    %s10 = scalar_lea.sflag [#allocation4], 1
    %11 = vsyncpa %s10, 0
    loop: start=0, step=1, limit=4
    $region2: #{tpu_custom_call.1} parent=1 // loop_pre_header
      _
    $region3: #{tpu_custom_call.1} parent=1 // loop_header
      %s13 = sphi 0, %s17
      %p14 = scmp.ge.s32.totalorder %s13, 4
      %s20 = sphi 0, %s39
      %s21 = sphi 0, %s35
      %s22 = sphi 0, %s31
      %s23 = sphi 0, %s20
      %s24 = sphi 0, %s21
      %s25 = sphi 0, %s22
      %s26 = sphi 0, %s23
      %s27 = sphi 0, %s24
      %s28 = sphi 0, %s25
      %s46 = sphi 0, %s48
      %s49 = sphi 0, %s46
      %s50 = sphi 0, %s49
      %s66 = sphi 0, %s50
      %s76 = sphi 0, %s78
      %s79 = sphi 0, %s76
      %s80 = sphi 0, %s79
      %s96 = sphi 0, %s80
    $region4: #{tpu_custom_call.1} parent=1 // loop_header_branch
      %16 = sbr.rel (%p14) target = $region8
    $region5: #{tpu_custom_call.1} parent=1 // loop_body
      %s18 = ssub.s32 %s13, 1
      %s19 = ssub.s32 %s13, 2
      %s29 = sadd.s32 1, %s22
      %p30 = scmp.ge.s32.totalorder %s29, 1
      %s31 = scalar_select %p30, 0, %s29
      %s32 = sadd.s32 1, %s21
      %s33 = scalar_select %p30, %s32, %s21
      %p34 = scmp.ge.s32.totalorder %s33, 1
      %s35 = scalar_select %p34, 0, %s33
      %s36 = sadd.s32 1, %s20
      %s37 = scalar_select %p34, %s36, %s20
      %p38 = scmp.ge.s32.totalorder %s37, 2
      %s39 = scalar_select %p38, 0, %s37
      %s40 = ssub.s32 %s20, %s39
      %s41 = ssub.s32 %s21, %s35
      %s42 = sor.u32 %s40, %s41
      %s43 = ssub.s32 %s22, %s31
      %s44 = sor.u32 %s42, %s43
      %p45 = scmp.eq.s32.totalorder %s44, 0
      %s47 = sadd.s32 %s46, 1
      %s48 = scalar_select %p45, %s46, %s47
      %p51 = pneg %p45
      %p52 = scmp.eq.s32.totalorder %s13, 1
      %p53 = por %p51, %p52
      %p54 = scmp.ne.s32.totalorder %s46, %s49
      %p55 = scmp.eq.s32.totalorder %s13, 0
      %p56 = por %p54, %p55
      %p57 = scmp.ne.s32.totalorder %s46, %s49
      %p58 = scmp.eq.s32.totalorder %s18, 1
      %p59 = por %p57, %p58
      %p60 = scmp.ne.s32.totalorder %s49, %s50
      %p61 = scmp.eq.s32.totalorder %s18, 0
      %p62 = por %p60, %p61
      %p63 = scmp.ne.s32.totalorder %s49, %s50
      %p64 = scmp.eq.s32.totalorder %s19, 1
      %p65 = por %p63, %p64
      %p67 = scmp.ne.s32.totalorder %s50, %s66
      %p68 = scmp.eq.s32.totalorder %s19, 0
      %p69 = por %p67, %p68
      %s70 = ssub.s32 %s20, %s39
      %s71 = ssub.s32 %s21, %s35
      %s72 = sor.u32 %s70, %s71
      %s73 = ssub.s32 %s22, %s31
      %s74 = sor.u32 %s72, %s73
      %p75 = scmp.eq.s32.totalorder %s74, 0
      %s77 = sadd.s32 %s76, 1
      %s78 = scalar_select %p75, %s76, %s77
      %p81 = pneg %p75
      %p82 = scmp.eq.s32.totalorder %s13, 1
      %p83 = por %p81, %p82
      %p84 = scmp.ne.s32.totalorder %s76, %s79
      %p85 = scmp.eq.s32.totalorder %s13, 0
      %p86 = por %p84, %p85
      %p87 = scmp.ne.s32.totalorder %s76, %s79
      %p88 = scmp.eq.s32.totalorder %s18, 1
      %p89 = por %p87, %p88
      %p90 = scmp.ne.s32.totalorder %s79, %s80
      %p91 = scmp.eq.s32.totalorder %s18, 0
      %p92 = por %p90, %p91
      %p93 = scmp.ne.s32.totalorder %s79, %s80
      %p94 = scmp.eq.s32.totalorder %s19, 1
      %p95 = por %p93, %p94
      %p97 = scmp.ne.s32.totalorder %s80, %s96
      %p98 = scmp.eq.s32.totalorder %s19, 0
      %p99 = por %p97, %p98
      %p100 = scmp.le.s32.totalorder 1, %s13
      %p101 = scmp.lt.s32.totalorder %s13, 3
      %p102 = pnand %p100, %p101
      %p103 = pneg %p102
      // Predicated region
      $region9: #{tpu_custom_call.1} parent=5 // pred_check
        _
      $region10: #{tpu_custom_call.1} parent=5 // pred_check_branch
        %105 = sbr.rel (%p102) target = $region12
      $region11: #{tpu_custom_call.1} parent=5 // pred_region
        %s106 = ssub.s32 %s13, 1
      $region12: #{tpu_custom_call.1} parent=5 // pred_fallthru
        _
      %p107 = scmp.lt.s32.totalorder %s13, 2
      // Predicated region
      $region13: #{tpu_custom_call.1} parent=5 // pred_check
        %p108 = pneg %p107
      $region14: #{tpu_custom_call.1} parent=5 // pred_check_branch
        %110 = sbr.rel (%p108) target = $region16
      $region15: #{tpu_custom_call.1} parent=5 // pred_region
        // Predicated region
        $region17: #{tpu_custom_call.1} parent=15 // pred_check
          %p111 = pneg %p56
        $region18: #{tpu_custom_call.1} parent=15 // pred_check_branch
          %113 = sbr.rel (%p111) target = $region20
        $region19: #{tpu_custom_call.1} parent=15 // pred_region
          %s114 = sand.u32 %s46, 1
          %s115 = scalar_lea.sflag [#allocation3], %s114
          %s116 = sand.u32 %s46, 1
          %s117 = smul.addr %s116, 8
          %s118 = scalar_lea.vmem [#allocation2], %s117
          %s120 = ssub.s32 128, 128
          %121 = vsyncadd %s115, %s120
          %s122 = sadd.s32 %s22, %s21
          %s123 = sadd.s32 %s122, %s20
          %s124 = smul.addr %s123, 128
          %s125 = scalar_lea.hbm %s0, %s124
          %s127 = sshll.u32 %s118, 4
          %s128 = int_to_ptr.vmem [resolvable:$true] %s127
          %130 = dma.hbm_to_vmem [thread:$0]  %s125, 128, %s128, %s115
        $region20: #{tpu_custom_call.1} parent=15 // pred_fallthru
          _
      $region16: #{tpu_custom_call.1} parent=5 // pred_fallthru
        _
      %p131 = scmp.le.s32.totalorder 1, %s13
      %p132 = scmp.lt.s32.totalorder %s13, 3
      %p133 = pnand %p131, %p132
      %p134 = pneg %p133
      // Predicated region
      $region21: #{tpu_custom_call.1} parent=5 // pred_check
        _
      $region22: #{tpu_custom_call.1} parent=5 // pred_check_branch
        %136 = sbr.rel (%p133) target = $region24
      $region23: #{tpu_custom_call.1} parent=5 // pred_region
        %s137 = ssub.s32 %s13, 1
        %s138 = sand.u32 %s49, 1
        %s139 = scalar_lea.sflag [#allocation3], %s138
        %s140 = sand.u32 %s49, 1
        %s141 = smul.addr %s140, 8
        %s142 = scalar_lea.vmem [#allocation2], %s141
        // Predicated region
        $region25: #{tpu_custom_call.1} parent=23 // pred_check
          %p143 = pneg %p62
        $region26: #{tpu_custom_call.1} parent=23 // pred_check_branch
          %145 = sbr.rel (%p143) target = $region28
        $region27: #{tpu_custom_call.1} parent=23 // pred_region
          %146 = dma.done %s139, 128
        $region28: #{tpu_custom_call.1} parent=23 // pred_fallthru
          _
        %s147 = sand.u32 %s49, 1
        %s148 = scalar_lea.sflag [#allocation3], %s147
        %s149 = sand.u32 %s49, 1
        %s150 = smul.addr %s149, 8
        %s151 = scalar_lea.vmem [#allocation2], %s150
        %p152 = pneg %p62
        %p153 = pneg %p59
        %p154 = pneg %p92
        %p155 = pneg %p89
        %s156 = sand.u32 %s79, 1
        %s157 = scalar_lea.sflag [#allocation4], %s156
        %s158 = sand.u32 %s79, 1
        %s159 = smul.addr %s158, 32
        %s160 = scalar_lea.vmem [#allocation5], %s159
        %v161 = vld [vmem:[%s142] sm:$0xff]
        %v162 = vmul.f32 %v161, %v161
        %v163 = vmul.f32 %v162, %v162
        %v164 = vmul.f32 %v163, %v163
        %165 = vst [vmem:[%s160] sm:$0xff] %v164
        %v166 = vmax.f32 %v161, 0.0
        %v167 = vmin.f32 %v166, 1.0
        %v168 = vlog2.pop %v167
        %v169 = vmul.f32 %v168, 0.6931472
        %v170 = vmul.f32 %v169, 0.125
        %v171 = vmul.f32 %v170, 1.442695
        %v172 = vpow.pop %v171
        %s173 = scalar_lea.vmem %s160, 8 [#allocation5]
        %174 = vst [vmem:[%s173] sm:$0xff] %v172
        %v175 = vadd.f32 %v167, 1.0
        %v176 = vlog2.pop %v175
        %v177 = vmul.f32 %v176, 0.6931472
        %v178 = vmul.f32 %v177, 1.442695
        %s179 = scalar_lea.vmem %s160, 16 [#allocation5]
        %180 = vst [vmem:[%s179] sm:$0xff] %v178
        %v181 = vsub.f32 %v161, 1.0
        %v182 = vmul.f32 %v181, 1.442695
        %v183 = vpow.pop %v182
        %s184 = scalar_lea.vmem %s160, 24 [#allocation5]
        %185 = vst [vmem:[%s184] sm:$0xff] %v183
        %s186 = sand.u32 %s79, 1
        %s187 = scalar_lea.sflag [#allocation4], %s186
        %s188 = sand.u32 %s79, 1
        %s189 = smul.addr %s188, 32
        %s190 = scalar_lea.vmem [#allocation5], %s189
        // Predicated region
        $region29: #{tpu_custom_call.1} parent=23 // pred_check
          %p191 = pneg %p89
        $region30: #{tpu_custom_call.1} parent=23 // pred_check_branch
          %193 = sbr.rel (%p191) target = $region32
        $region31: #{tpu_custom_call.1} parent=23 // pred_region
          %s195 = ssub.s32 512, 512
          %196 = vsyncadd %s187, %s195
          %s197 = sadd.s32 %s25, %s24
          %s198 = smul.addr %s23, 4
          %s199 = sadd.s32 %s197, %s198
          %s200 = smul.addr %s199, 128
          %s201 = scalar_lea.hbm %s1, %s200
          %s202 = sshll.u32 %s190, 4
          %s203 = int_to_ptr.vmem [resolvable:$true] %s202
          %208 = dma.vmem_to_hbm [thread:$0]  %s203, 512, %s201, %s187, 128, 128, 8
        $region32: #{tpu_custom_call.1} parent=23 // pred_fallthru
          _
      $region24: #{tpu_custom_call.1} parent=5 // pred_fallthru
        _
      %p209 = scmp.le.s32.totalorder 2, %s13
      // Predicated region
      $region33: #{tpu_custom_call.1} parent=5 // pred_check
        %p210 = pneg %p209
      $region34: #{tpu_custom_call.1} parent=5 // pred_check_branch
        %212 = sbr.rel (%p210) target = $region36
      $region35: #{tpu_custom_call.1} parent=5 // pred_region
        %s213 = ssub.s32 %s13, 2
        // Predicated region
        $region37: #{tpu_custom_call.1} parent=35 // pred_check
          %p214 = pneg %p95
        $region38: #{tpu_custom_call.1} parent=35 // pred_check_branch
          %216 = sbr.rel (%p214) target = $region40
        $region39: #{tpu_custom_call.1} parent=35 // pred_region
          %s217 = sand.u32 %s80, 1
          %s218 = scalar_lea.sflag [#allocation4], %s217
          %s219 = sand.u32 %s80, 1
          %s220 = smul.addr %s219, 32
          %s221 = scalar_lea.vmem [#allocation5], %s220
          %222 = dma.done %s218, 512
        $region40: #{tpu_custom_call.1} parent=35 // pred_fallthru
          _
      $region36: #{tpu_custom_call.1} parent=5 // pred_fallthru
        _
    $region6: #{tpu_custom_call.1} parent=1 // loop_footer
      %s17 = sadd.s32 1, %s13
    $region7: #{tpu_custom_call.1} parent=1 // loop_footer_branch
      %12 = sbr.rel target = $region3
    $region8: #{tpu_custom_call.1} parent=1 // loop_exit
      _
    %223 = vsyncpa [#allocation3], 1
    %s224 = scalar_lea.sflag [#allocation3], 1
    %225 = vsyncpa %s224, 1
    %226 = vsyncpa [#allocation4], 1
    %s227 = scalar_lea.sflag [#allocation4], 1
    %228 = vsyncpa %s227, 1

</llo_original>
